<compile_context>
chip_gen: v6e
topology: v6e:2x2x1
jax: 0.10.0
libtpu: 0.0.40
codegen_flags: <defaults>
</compile_context>

<pallas_src>
import jax
import jax.numpy as jnp
from jax import lax
from jax.experimental import pallas as pl
from jax.experimental.pallas import tpu as pltpu

LINEAR_DIM0 = 30          # input features
LINEAR_DIM1 = 90          # hidden features
LINEAR_DIM2 = 2           # output features
HIDDEN_PAD = 128          # 90 -> 128: one MXU/vreg lane tile on every TPU gen
LEAKY_SLOPE = 0.01        # nn.LeakyReLU() default negative_slope
DEFAULT_BLOCK_BATCH = 8192          # rows per grid step (amortizes ~0.35us/step)
_VMEM_LIMIT_BYTES = 48 * 1024 * 1024  # explicit scoped-VMEM limit (safe on v5e/v6e/v7x)


def _net_kernel(x_ref, w1_ref, b1_ref, w2_ref, b2_ref, o_ref):
    """One batch tile, feature-major dataflow.

    x_ref:  (TB, 30)   activation tile (HBM dtype, cast to MXU dtype here)
    w1_ref: (128, 30)  layer-1 weight, PyTorch [out, in], hidden zero-padded
    b1_ref: (128, 1)   layer-1 bias (f32)
    w2_ref: (2, 128)   layer-2 weight, PyTorch [out, in], hidden zero-padded
    b2_ref: (2, 1)     layer-2 bias (f32)
    o_ref:  (2, TB)    feature-major output tile (lane-dense store)
    """
    x = x_ref[...].astype(w1_ref.dtype)                     # cast on VPU (free-ish)
    # h_t = w1 @ x^T : (128, 30) x (TB, 30)^T -> (128, TB), f32 accumulation.
    h = lax.dot_general(w1_ref[...], x,
                        dimension_numbers=(((1,), (1,)), ((), ())),
                        preferred_element_type=jnp.float32)
    h = h + b1_ref[...]                                      # f32 bias
    h = jnp.where(h >= 0.0, h, LEAKY_SLOPE * h)              # LeakyReLU in f32
    # y_t = w2 @ h_t : (2, 128) x (128, TB) -> (2, TB), f32 accumulation.
    y = jnp.dot(w2_ref[...], h.astype(w2_ref.dtype),
                preferred_element_type=jnp.float32)
    o_ref[...] = (y + b2_ref[...]).astype(o_ref.dtype)


def _round_up(v, m):
    return ((v + m - 1) // m) * m


def net_forward(x, w1, b1, w2, b2, decode=False, *,
                mxu_dtype=jnp.bfloat16,
                block_batch=DEFAULT_BLOCK_BATCH):
    """Forward pass of Net (decode() is identity in the reference module).

    x:  (B, 30)
    w1: (90, 30)  b1: (90,)     -- PyTorch nn.Linear [out, in] layout
    w2: (2, 90)   b2: (2,)
    """
    batch = x.shape[0]
    pad_h = HIDDEN_PAD - LINEAR_DIM1

    # Tiny grid-resident operands: pad hidden 90 -> 128 (numerically exact:
    # zero b1 pad, LeakyReLU(0)=0, zero w2 columns contribute nothing).
    w1p = jnp.pad(w1, ((0, pad_h), (0, 0))).astype(mxu_dtype)           # (128, 30)
    b1p = jnp.pad(b1, (0, pad_h)).reshape(HIDDEN_PAD, 1).astype(jnp.float32)
    w2p = jnp.pad(w2, ((0, 0), (0, pad_h))).astype(mxu_dtype)           # (2, 128)
    b2p = b2.reshape(LINEAR_DIM2, 1).astype(jnp.float32)                # (2, 1)

    # Batch tiling. No wrapper-side pad/cast of x: the grid over-covers the
    # ragged tail; out-of-bounds output columns are masked off by Pallas.
    if batch <= 1024:
        tb = batch                                   # single block, exact dims
    else:
        # >= 2 blocks (v7x megacore), rows a multiple of 512, capped at block_batch.
        tb = min(block_batch, _round_up(pl.cdiv(batch, 2), 512))
    num_blocks = pl.cdiv(batch, tb)

    cost = pl.CostEstimate(
        flops=2 * batch * (LINEAR_DIM0 * HIDDEN_PAD + HIDDEN_PAD * LINEAR_DIM2),
        transcendentals=0,
        bytes_accessed=(batch * LINEAR_DIM0 * x.dtype.itemsize            # x read
                        + batch * LINEAR_DIM2 * 4                          # out write
                        + (HIDDEN_PAD * LINEAR_DIM0 + LINEAR_DIM2 * HIDDEN_PAD)
                        * jnp.dtype(mxu_dtype).itemsize                    # weights
                        + (HIDDEN_PAD + LINEAR_DIM2) * 4),                 # biases
    )

    out_t = pl.pallas_call(
        _net_kernel,
        out_shape=jax.ShapeDtypeStruct((LINEAR_DIM2, batch), jnp.float32),
        grid_spec=pl.GridSpec(
            grid=(num_blocks,),
            in_specs=[
                # batch-tiled activation (feature dim left at 30 in HBM)
                pl.BlockSpec((tb, LINEAR_DIM0), lambda i: (i, 0)),
                # grid-invariant weights / biases (same block every step)
                pl.BlockSpec((HIDDEN_PAD, LINEAR_DIM0), lambda i: (0, 0)),
                pl.BlockSpec((HIDDEN_PAD, 1), lambda i: (0, 0)),
                pl.BlockSpec((LINEAR_DIM2, HIDDEN_PAD), lambda i: (0, 0)),
                pl.BlockSpec((LINEAR_DIM2, 1), lambda i: (0, 0)),
            ],
            # lane-dense, feature-major output tile
            out_specs=pl.BlockSpec((LINEAR_DIM2, tb), lambda i: (0, i)),
        ),
        compiler_params=pltpu.CompilerParams(
            dimension_semantics=("parallel",),
            vmem_limit_bytes=_VMEM_LIMIT_BYTES),
        cost_estimate=cost,
    )(x, w1p, b1p, w2p, b2p)

    # (2, B) -> (B, 2) to match the PyTorch module's output layout.
    # decode() in the PyTorch module is identity; nothing else to do.
    return out_t.T


def init_params(key):
    """Deterministic init mimicking nn.Linear's uniform(-1/sqrt(fan_in), ...).

    Weights are in PyTorch [out, in] layout (exactly what the kernel wants).
    """
    k1, k2, k3, k4 = jax.random.split(key, 4)
    bound1 = 1.0 / jnp.sqrt(float(LINEAR_DIM0))
    bound2 = 1.0 / jnp.sqrt(float(LINEAR_DIM1))
    w1 = jax.random.uniform(k1, (LINEAR_DIM1, LINEAR_DIM0), jnp.float32,
                            -bound1, bound1)
    b1 = jax.random.uniform(k2, (LINEAR_DIM1,), jnp.float32, -bound1, bound1)
    w2 = jax.random.uniform(k3, (LINEAR_DIM2, LINEAR_DIM1), jnp.float32,
                            -bound2, bound2)
    b2 = jax.random.uniform(k4, (LINEAR_DIM2,), jnp.float32, -bound2, bound2)
    return w1, b1, w2, b2


def reference_forward(x, w1, b1, w2, b2):
    h = x @ w1.T + b1
    h = jnp.where(h >= 0.0, h, LEAKY_SLOPE * h)
    return h @ w2.T + b2


if __name__ == "__main__":
    key = jax.random.PRNGKey(0)
    kx, kp = jax.random.split(key)
    w1, b1, w2, b2 = init_params(kp)

    # Small single-block case, f32 MXU-operand path (tight tolerance).
    x_small = jax.random.normal(kx, (8, LINEAR_DIM0), jnp.float32)
    ref_small = reference_forward(x_small, w1, b1, w2, b2)
    out_small = jax.block_until_ready(
        net_forward(x_small, w1, b1, w2, b2, decode=True,
                    mxu_dtype=jnp.float32))
    assert out_small.shape == (8, LINEAR_DIM2)
    assert jnp.allclose(out_small, ref_small, atol=1e-4, rtol=1e-4)

    # Multi-block ragged case (grid=2, partial tail tile), default bf16 MXU
    # operands with f32 accumulation.
    x_big = jax.random.normal(kx, (1300, LINEAR_DIM0), jnp.float32)
    ref_big = reference_forward(x_big, w1, b1, w2, b2)
    out_big = jax.block_until_ready(
        net_forward(x_big, w1, b1, w2, b2, decode=True))
    assert out_big.shape == (1300, LINEAR_DIM2)
    assert jnp.allclose(out_big, ref_big, atol=5e-2, rtol=5e-2)

    print("KERNEL_OK")
</pallas_src>

<mosaic_0001>
module attributes {stable_mosaic.version = 11 : i64} {
  func.func @_net_kernel(%arg0: i32, %arg1: memref<8x30xf32, #tpu.memory_space<vmem>>, %arg2: memref<128x30xf32, #tpu.memory_space<vmem>>, %arg3: memref<128x1xf32, #tpu.memory_space<vmem>>, %arg4: memref<2x128xf32, #tpu.memory_space<vmem>>, %arg5: memref<2x1xf32, #tpu.memory_space<vmem>>, %arg6: memref<2x8xf32, #tpu.memory_space<vmem>>) attributes {dimension_semantics = [#tpu.dimension_semantics<parallel>], iteration_bounds = array<i64: 1>, scalar_prefetch = 0 : i64, scratch_operands = 0 : i64, tpu.core_type = #tpu.core_type<tc>, window_params = [{transform_indices = @transform_0, window_bounds = array<i64: 8, 30>}, {pipeline_mode = #tpu.pipeline_mode<synchronous>, transform_indices = @transform_1, window_bounds = array<i64: 128, 30>}, {pipeline_mode = #tpu.pipeline_mode<synchronous>, transform_indices = @transform_2, window_bounds = array<i64: 128, 1>}, {pipeline_mode = #tpu.pipeline_mode<synchronous>, transform_indices = @transform_3, window_bounds = array<i64: 2, 128>}, {pipeline_mode = #tpu.pipeline_mode<synchronous>, transform_indices = @transform_4, window_bounds = array<i64: 2, 1>}, {transform_indices = @transform_5, window_bounds = array<i64: 2, 8>}]} {
    %c0 = arith.constant 0 : index
    %c0_0 = arith.constant 0 : index
    %0 = vector.load %arg1[%c0, %c0_0] : memref<8x30xf32, #tpu.memory_space<vmem>>, vector<8x30xf32>
    %c0_1 = arith.constant 0 : index
    %c0_2 = arith.constant 0 : index
    %1 = vector.load %arg2[%c0_1, %c0_2] : memref<128x30xf32, #tpu.memory_space<vmem>>, vector<128x30xf32>
    %cst = arith.constant dense<0.000000e+00> : vector<128x8xf32>
    %2 = tpu.matmul %1, %0, %cst {dimension_numbers = #tpu.dot_dimension_numbers<[1], [1], [0], [0], [0, 0, 1, 0], [], []>} : vector<128x30xf32>, vector<8x30xf32>, vector<128x8xf32> -> vector<128x8xf32>
    %c0_3 = arith.constant 0 : index
    %c0_4 = arith.constant 0 : index
    %3 = vector.load %arg3[%c0_3, %c0_4] : memref<128x1xf32, #tpu.memory_space<vmem>>, vector<128x1xf32>
    %4 = vector.broadcast %3 : vector<128x1xf32> to vector<128x8xf32>
    %5 = arith.addf %2, %4 : vector<128x8xf32>
    %cst_5 = arith.constant 0.000000e+00 : f32
    %6 = vector.broadcast %cst_5 : f32 to vector<128x8xf32>
    %7 = arith.cmpf oge, %5, %6 : vector<128x8xf32>
    %cst_6 = arith.constant 0.00999999977 : f32
    %8 = vector.broadcast %cst_6 : f32 to vector<128x8xf32>
    %9 = arith.mulf %8, %5 : vector<128x8xf32>
    %10 = arith.select %7, %5, %9 : vector<128x8xi1>, vector<128x8xf32>
    %c0_7 = arith.constant 0 : index
    %c0_8 = arith.constant 0 : index
    %11 = vector.load %arg4[%c0_7, %c0_8] : memref<2x128xf32, #tpu.memory_space<vmem>>, vector<2x128xf32>
    %cst_9 = arith.constant dense<0.000000e+00> : vector<2x8xf32>
    %12 = tpu.matmul %11, %10, %cst_9 {dimension_numbers = #tpu.dot_dimension_numbers<[1], [0], [0], [1], [0, 0, 1, 1], [], []>} : vector<2x128xf32>, vector<128x8xf32>, vector<2x8xf32> -> vector<2x8xf32>
    %c0_10 = arith.constant 0 : index
    %c0_11 = arith.constant 0 : index
    %13 = vector.load %arg5[%c0_10, %c0_11] : memref<2x1xf32, #tpu.memory_space<vmem>>, vector<2x1xf32>
    %14 = vector.broadcast %13 : vector<2x1xf32> to vector<2x8xf32>
    %15 = arith.addf %12, %14 : vector<2x8xf32>
    %c0_12 = arith.constant 0 : index
    %c0_13 = arith.constant 0 : index
    %16 = vector.load %arg6[%c0_12, %c0_13] : memref<2x8xf32, #tpu.memory_space<vmem>>, vector<2x8xf32>
    tpu.vector_store %arg6[%c0_12, %c0_13], %15 {strides = array<i32>} : memref<2x8xf32, #tpu.memory_space<vmem>>, vector<2x8xf32>,
    return
  }
  func.func @transform_0(%arg0: i32) -> (i32, i32) {
    %c0_i32 = arith.constant 0 : i32
    %c0_i32_0 = arith.constant 0 : i32
    return %arg0, %c0_i32 : i32, i32
  }
  func.func @transform_1(%arg0: i32) -> (i32, i32) {
    %c0_i32 = arith.constant 0 : i32
    %c0_i32_0 = arith.constant 0 : i32
    %c0_i32_1 = arith.constant 0 : i32
    return %c0_i32, %c0_i32_0 : i32, i32
  }
  func.func @transform_2(%arg0: i32) -> (i32, i32) {
    %c0_i32 = arith.constant 0 : i32
    %c0_i32_0 = arith.constant 0 : i32
    %c0_i32_1 = arith.constant 0 : i32
    return %c0_i32, %c0_i32_0 : i32, i32
  }
  func.func @transform_3(%arg0: i32) -> (i32, i32) {
    %c0_i32 = arith.constant 0 : i32
    %c0_i32_0 = arith.constant 0 : i32
    %c0_i32_1 = arith.constant 0 : i32
    return %c0_i32, %c0_i32_0 : i32, i32
  }
  func.func @transform_4(%arg0: i32) -> (i32, i32) {
    %c0_i32 = arith.constant 0 : i32
    %c0_i32_0 = arith.constant 0 : i32
    %c0_i32_1 = arith.constant 0 : i32
    return %c0_i32, %c0_i32_0 : i32, i32
  }
  func.func @transform_5(%arg0: i32) -> (i32, i32) {
    %c0_i32 = arith.constant 0 : i32
    %c0_i32_0 = arith.constant 0 : i32
    return %c0_i32, %arg0 : i32, i32
  }
}

</mosaic_0001>

<llo_original>
// kernel: tpu_custom_call.1
$region0: #{tpu_custom_call.1}
  #allocation0 [shape = 'u32[]', space=smem, size = 0x4, offset = 0x4, fixed_abs, tag = 'smem constant byte address 0x4 - core index']
  #allocation1 [shape = 'u32[144,128]{1,0:T(1,128)}', space=vmem, size = 0x12000, scoped, tag = 'internal scratch']
  %s0 = inlined_call_operand.vmem [shape: f32[8,30], index: 0, kind: input, shape index: {}]
  %s1 = inlined_call_operand.vmem [shape: f32[128,30], index: 1, kind: input, shape index: {}]
  %s2 = inlined_call_operand.vmem [shape: f32[128,1], index: 2, kind: input, shape index: {}]
  %s3 = inlined_call_operand.vmem [shape: f32[2,128], index: 3, kind: input, shape index: {}]
  %s4 = inlined_call_operand.vmem [shape: f32[2,1], index: 4, kind: input, shape index: {}]
  %s5 = inlined_call_operand.hbm [shape: f32[2,8], index: 5, kind: output, shape index: {}]
  %s6 = sld [smem:[#allocation0]]
  $region30: #{tpu_custom_call.1} parent=0
    _
  %s8 = ssub.s32 1, %s6
  %s9 = scalar_select 0, %s8, %s6
  $region1: #{tpu_custom_call.1} parent=0
    #allocation2 [shape = 'u8[1024]{0}', space=vmem, size = 0x400, scoped, tag = 'output window, operand 0, single buffered']
    #allocation3 [shape = 's32[1]{0}', space=sflag, size = 0x4, scoped, tag = 'scoped memory for tpu_custom_call.1']
    %10 = vsyncpa [#allocation3], 0
    // Predicated region
    $region2: #{tpu_custom_call.1} parent=1 // pred_check
      _
    $region3: #{tpu_custom_call.1} parent=1 // pred_check_branch
      %12 = sbr.rel (0) target = $region5
    $region4: #{tpu_custom_call.1} parent=1 // pred_region
      _
    $region5: #{tpu_custom_call.1} parent=1 // pred_fallthru
      _
    // Predicated region
    $region6: #{tpu_custom_call.1} parent=1 // pred_check
      _
    $region7: #{tpu_custom_call.1} parent=1 // pred_check_branch
      %14 = sbr.rel (0) target = $region9
    $region8: #{tpu_custom_call.1} parent=1 // pred_region
      _
    $region9: #{tpu_custom_call.1} parent=1 // pred_fallthru
      _
    // Predicated region
    $region10: #{tpu_custom_call.1} parent=1 // pred_check
      _
    $region11: #{tpu_custom_call.1} parent=1 // pred_check_branch
      %16 = sbr.rel (0) target = $region13
    $region12: #{tpu_custom_call.1} parent=1 // pred_region
      _
    $region13: #{tpu_custom_call.1} parent=1 // pred_fallthru
      _
    // Predicated region
    $region14: #{tpu_custom_call.1} parent=1 // pred_check
      _
    $region15: #{tpu_custom_call.1} parent=1 // pred_check_branch
      %18 = sbr.rel (0) target = $region17
    $region16: #{tpu_custom_call.1} parent=1 // pred_region
      _
    $region17: #{tpu_custom_call.1} parent=1 // pred_fallthru
      _
    // Predicated region
    $region18: #{tpu_custom_call.1} parent=1 // pred_check
      _
    $region19: #{tpu_custom_call.1} parent=1 // pred_check_branch
      %20 = sbr.rel (0) target = $region21
    $region20: #{tpu_custom_call.1} parent=1 // pred_region
      _
    $region21: #{tpu_custom_call.1} parent=1 // pred_fallthru
      _
    %v21 = vld [vmem:[%s0] sm:$0xff]
    %v22 = vld [vmem:[%s1] sm:$0xff]
    %v23 = vld [vmem:[%s1 + $0x8] sm:$0xff]
    %v24 = vld [vmem:[%s1 + $0x10] sm:$0xff]
    %v25 = vld [vmem:[%s1 + $0x18] sm:$0xff]
    %v26 = vld [vmem:[%s1 + $0x20] sm:$0xff]
    %v27 = vld [vmem:[%s1 + $0x28] sm:$0xff]
    %v28 = vld [vmem:[%s1 + $0x30] sm:$0xff]
    %v29 = vld [vmem:[%s1 + $0x38] sm:$0xff]
    %v30 = vld [vmem:[%s1 + $0x40] sm:$0xff]
    %v31 = vld [vmem:[%s1 + $0x48] sm:$0xff]
    %v32 = vld [vmem:[%s1 + $0x50] sm:$0xff]
    %v33 = vld [vmem:[%s1 + $0x58] sm:$0xff]
    %v34 = vld [vmem:[%s1 + $0x60] sm:$0xff]
    %v35 = vld [vmem:[%s1 + $0x68] sm:$0xff]
    %v36 = vld [vmem:[%s1 + $0x70] sm:$0xff]
    %v37 = vld [vmem:[%s1 + $0x78] sm:$0xff]
    %v38 = vld [vmem:[%s2] sm:$0xff]
    %v39 = vld [vmem:[%s2 + $0x8] sm:$0xff]
    %v40 = vld [vmem:[%s2 + $0x10] sm:$0xff]
    %v41 = vld [vmem:[%s2 + $0x18] sm:$0xff]
    %v42 = vld [vmem:[%s2 + $0x20] sm:$0xff]
    %v43 = vld [vmem:[%s2 + $0x28] sm:$0xff]
    %v44 = vld [vmem:[%s2 + $0x30] sm:$0xff]
    %v45 = vld [vmem:[%s2 + $0x38] sm:$0xff]
    %v46 = vld [vmem:[%s2 + $0x40] sm:$0xff]
    %v47 = vld [vmem:[%s2 + $0x48] sm:$0xff]
    %v48 = vld [vmem:[%s2 + $0x50] sm:$0xff]
    %v49 = vld [vmem:[%s2 + $0x58] sm:$0xff]
    %v50 = vld [vmem:[%s2 + $0x60] sm:$0xff]
    %v51 = vld [vmem:[%s2 + $0x68] sm:$0xff]
    %v52 = vld [vmem:[%s2 + $0x70] sm:$0xff]
    %v53 = vld [vmem:[%s2 + $0x78] sm:$0xff]
    %55 = vset.pattern.permute.xlu0 0
    %56 = vperm.xlu0 %55, %v38
    %v57 = vpop.permute.xlu0 %56
    %60 = vset.pattern.permute.xlu0 0
    %61 = vperm.xlu0 %60, %v39
    %v62 = vpop.permute.xlu0 %61
    %65 = vset.pattern.permute.xlu0 0
    %66 = vperm.xlu0 %65, %v40
    %v67 = vpop.permute.xlu0 %66
    %70 = vset.pattern.permute.xlu0 0
    %71 = vperm.xlu0 %70, %v41
    %v72 = vpop.permute.xlu0 %71
    %75 = vset.pattern.permute.xlu0 0
    %76 = vperm.xlu0 %75, %v42
    %v77 = vpop.permute.xlu0 %76
    %80 = vset.pattern.permute.xlu0 0
    %81 = vperm.xlu0 %80, %v43
    %v82 = vpop.permute.xlu0 %81
    %85 = vset.pattern.permute.xlu0 0
    %86 = vperm.xlu0 %85, %v44
    %v87 = vpop.permute.xlu0 %86
    %90 = vset.pattern.permute.xlu0 0
    %91 = vperm.xlu0 %90, %v45
    %v92 = vpop.permute.xlu0 %91
    %95 = vset.pattern.permute.xlu0 0
    %96 = vperm.xlu0 %95, %v46
    %v97 = vpop.permute.xlu0 %96
    %100 = vset.pattern.permute.xlu0 0
    %101 = vperm.xlu0 %100, %v47
    %v102 = vpop.permute.xlu0 %101
    %105 = vset.pattern.permute.xlu0 0
    %106 = vperm.xlu0 %105, %v48
    %v107 = vpop.permute.xlu0 %106
    %110 = vset.pattern.permute.xlu0 0
    %111 = vperm.xlu0 %110, %v49
    %v112 = vpop.permute.xlu0 %111
    %115 = vset.pattern.permute.xlu0 0
    %116 = vperm.xlu0 %115, %v50
    %v117 = vpop.permute.xlu0 %116
    %120 = vset.pattern.permute.xlu0 0
    %121 = vperm.xlu0 %120, %v51
    %v122 = vpop.permute.xlu0 %121
    %125 = vset.pattern.permute.xlu0 0
    %126 = vperm.xlu0 %125, %v52
    %v127 = vpop.permute.xlu0 %126
    %130 = vset.pattern.permute.xlu0 0
    %131 = vperm.xlu0 %130, %v53
    %v132 = vpop.permute.xlu0 %131
    %vm134 = vcmask 244736
    %v136 = vsel %vm134, %v22, 0
    %v139 = vsel %vm134, %v23, 0
    %v142 = vsel %vm134, %v24, 0
    %v145 = vsel %vm134, %v25, 0
    %v148 = vsel %vm134, %v26, 0
    %v151 = vsel %vm134, %v27, 0
    %v154 = vsel %vm134, %v28, 0
    %v157 = vsel %vm134, %v29, 0
    %v160 = vsel %vm134, %v30, 0
    %v163 = vsel %vm134, %v31, 0
    %v166 = vsel %vm134, %v32, 0
    %v169 = vsel %vm134, %v33, 0
    %v172 = vsel %vm134, %v34, 0
    %v175 = vsel %vm134, %v35, 0
    %v178 = vsel %vm134, %v36, 0
    %v181 = vsel %vm134, %v37, 0
    %v184 = vsel %vm134, %v21, 0
    %186 = vmatprep.subr.mxu0 0.0
    %187 = vmatpush1.xpose.msra.mxu0 0.0
    %188 = vmatprep.subr.mxu0 0.0
    %189 = vmatpush1.xpose.msra.mxu0 0.0
    %190 = vmatprep.subr.mxu0 0.0
    %191 = vmatpush1.xpose.msra.mxu0 0.0
    %192 = vmatprep.subr.mxu0 0.0
    %193 = vmatpush1.xpose.msra.mxu0 0.0
    %194 = vmatprep.subr.mxu0 0.0
    %195 = vmatpush1.xpose.msra.mxu0 0.0
    %196 = vmatprep.subr.mxu0 0.0
    %197 = vmatpush1.xpose.msra.mxu0 0.0
    %198 = vmatprep.subr.mxu0 0.0
    %199 = vmatpush1.xpose.msra.mxu0 0.0
    %200 = vmatprep.subr.mxu0 0.0
    %201 = vmatpush1.xpose.msra.mxu0 0.0
    %202 = vmatprep.subr.mxu0 0.0
    %203 = vmatpush1.xpose.msra.mxu0 0.0
    %204 = vmatprep.subr.mxu0 0.0
    %205 = vmatpush1.xpose.msra.mxu0 0.0
    %206 = vmatprep.subr.mxu0 0.0
    %207 = vmatpush1.xpose.msra.mxu0 0.0
    %208 = vmatprep.subr.mxu0 0.0
    %209 = vmatpush1.xpose.msra.mxu0 0.0
    %210 = vmatprep.subr.mxu0 0.0
    %211 = vmatpush1.xpose.msra.mxu0 0.0
    %212 = vmatprep.subr.mxu0 0.0
    %213 = vmatpush1.xpose.msra.mxu0 0.0
    %214 = vmatprep.subr.mxu0 0.0
    %215 = vmatpush1.xpose.msra.mxu0 0.0
    %216 = vmatprep.subr.mxu0 0.0
    %217 = vmatpush1.xpose.msra.mxu0 %v184
    %218 = vmatprep.subr.mxu0 0.0
    %219 = vmatpush2.xpose.msra.mxu0 0.0
    %220 = vmatprep.subr.mxu0 0.0
    %221 = vmatpush2.xpose.msra.mxu0 0.0
    %222 = vmatprep.subr.mxu0 0.0
    %223 = vmatpush2.xpose.msra.mxu0 0.0
    %224 = vmatprep.subr.mxu0 0.0
    %225 = vmatpush2.xpose.msra.mxu0 0.0
    %226 = vmatprep.subr.mxu0 0.0
    %227 = vmatpush2.xpose.msra.mxu0 0.0
    %228 = vmatprep.subr.mxu0 0.0
    %229 = vmatpush2.xpose.msra.mxu0 0.0
    %230 = vmatprep.subr.mxu0 0.0
    %231 = vmatpush2.xpose.msra.mxu0 0.0
    %232 = vmatprep.subr.mxu0 0.0
    %233 = vmatpush2.xpose.msra.mxu0 0.0
    %234 = vmatprep.subr.mxu0 0.0
    %235 = vmatpush2.xpose.msra.mxu0 0.0
    %236 = vmatprep.subr.mxu0 0.0
    %237 = vmatpush2.xpose.msra.mxu0 0.0
    %238 = vmatprep.subr.mxu0 0.0
    %239 = vmatpush2.xpose.msra.mxu0 0.0
    %240 = vmatprep.subr.mxu0 0.0
    %241 = vmatpush2.xpose.msra.mxu0 0.0
    %242 = vmatprep.subr.mxu0 0.0
    %243 = vmatpush2.xpose.msra.mxu0 0.0
    %244 = vmatprep.subr.mxu0 0.0
    %245 = vmatpush2.xpose.msra.mxu0 0.0
    %246 = vmatprep.subr.mxu0 0.0
    %247 = vmatpush2.xpose.msra.mxu0 0.0
    %248 = vmatprep.subr.mxu0 0.0
    %249 = vmatpush2.xpose.msra.mxu0 0.0
    %250 = vmatprep.mubr.f32.mxu0 0.0
    %251 = vmatmul.mubr.f32.gmra.mxu0 %v136
    %v252 = vpop.f32.mrf.mxu0
    %v253 = vadd.f32 %v57, %v252
    %v254 = vpop.f32.mrf.mxu0
    %255 = vmatprep.mubr.f32.mxu0 0.0
    %256 = vmatmul.mubr.f32.gmra.mxu0 %v139
    %v257 = vpop.f32.mrf.mxu0
    %v258 = vadd.f32 %v62, %v257
    %v259 = vpop.f32.mrf.mxu0
    %260 = vmatprep.mubr.f32.mxu0 0.0
    %261 = vmatmul.mubr.f32.gmra.mxu0 %v142
    %v262 = vpop.f32.mrf.mxu0
    %v263 = vadd.f32 %v67, %v262
    %v264 = vpop.f32.mrf.mxu0
    %265 = vmatprep.mubr.f32.mxu0 0.0
    %266 = vmatmul.mubr.f32.gmra.mxu0 %v145
    %v267 = vpop.f32.mrf.mxu0
    %v268 = vadd.f32 %v72, %v267
    %v269 = vpop.f32.mrf.mxu0
    %270 = vmatprep.mubr.f32.mxu0 0.0
    %271 = vmatmul.mubr.f32.gmra.mxu0 %v148
    %v272 = vpop.f32.mrf.mxu0
    %v273 = vadd.f32 %v77, %v272
    %v274 = vpop.f32.mrf.mxu0
    %275 = vmatprep.mubr.f32.mxu0 0.0
    %276 = vmatmul.mubr.f32.gmra.mxu0 %v151
    %v277 = vpop.f32.mrf.mxu0
    %v278 = vadd.f32 %v82, %v277
    %v279 = vpop.f32.mrf.mxu0
    %280 = vmatprep.mubr.f32.mxu0 0.0
    %281 = vmatmul.mubr.f32.gmra.mxu0 %v154
    %v282 = vpop.f32.mrf.mxu0
    %v283 = vadd.f32 %v87, %v282
    %v284 = vpop.f32.mrf.mxu0
    %285 = vmatprep.mubr.f32.mxu0 0.0
    %286 = vmatmul.mubr.f32.gmra.mxu0 %v157
    %v287 = vpop.f32.mrf.mxu0
    %v288 = vadd.f32 %v92, %v287
    %v289 = vpop.f32.mrf.mxu0
    %290 = vmatprep.mubr.f32.mxu0 0.0
    %291 = vmatmul.mubr.f32.gmra.mxu0 %v160
    %v292 = vpop.f32.mrf.mxu0
    %v293 = vadd.f32 %v97, %v292
    %v294 = vpop.f32.mrf.mxu0
    %295 = vmatprep.mubr.f32.mxu0 0.0
    %296 = vmatmul.mubr.f32.gmra.mxu0 %v163
    %v297 = vpop.f32.mrf.mxu0
    %v298 = vadd.f32 %v102, %v297
    %v299 = vpop.f32.mrf.mxu0
    %300 = vmatprep.mubr.f32.mxu0 0.0
    %301 = vmatmul.mubr.f32.gmra.mxu0 %v166
    %v302 = vpop.f32.mrf.mxu0
    %v303 = vadd.f32 %v107, %v302
    %v304 = vpop.f32.mrf.mxu0
    %305 = vmatprep.mubr.f32.mxu0 0.0
    %306 = vmatmul.mubr.f32.gmra.mxu0 %v169
    %v307 = vpop.f32.mrf.mxu0
    %v308 = vadd.f32 %v112, %v307
    %v309 = vpop.f32.mrf.mxu0
    %310 = vmatprep.mubr.f32.mxu0 0.0
    %311 = vmatmul.mubr.f32.gmra.mxu0 %v172
    %v312 = vpop.f32.mrf.mxu0
    %v313 = vadd.f32 %v117, %v312
    %v314 = vpop.f32.mrf.mxu0
    %315 = vmatprep.mubr.f32.mxu0 0.0
    %316 = vmatmul.mubr.f32.gmra.mxu0 %v175
    %v317 = vpop.f32.mrf.mxu0
    %v318 = vadd.f32 %v122, %v317
    %v319 = vpop.f32.mrf.mxu0
    %320 = vmatprep.mubr.f32.mxu0 0.0
    %321 = vmatmul.mubr.f32.gmra.mxu0 %v178
    %v322 = vpop.f32.mrf.mxu0
    %v323 = vadd.f32 %v127, %v322
    %v324 = vpop.f32.mrf.mxu0
    %325 = vmatprep.mubr.f32.mxu0 0.0
    %326 = vmatmul.mubr.f32.gmra.mxu0 %v181
    %v327 = vpop.f32.mrf.mxu0
    %v328 = vadd.f32 %v132, %v327
    %v329 = vpop.f32.mrf.mxu0
    %330 = vdwg.mxu0
    %vm331 = vcmp.ge.f32.partialorder %v253, 0.0
    %vm332 = vcmp.ge.f32.partialorder %v258, 0.0
    %vm333 = vcmp.ge.f32.partialorder %v263, 0.0
    %vm334 = vcmp.ge.f32.partialorder %v268, 0.0
    %vm335 = vcmp.ge.f32.partialorder %v273, 0.0
    %vm336 = vcmp.ge.f32.partialorder %v278, 0.0
    %vm337 = vcmp.ge.f32.partialorder %v283, 0.0
    %vm338 = vcmp.ge.f32.partialorder %v288, 0.0
    %vm339 = vcmp.ge.f32.partialorder %v293, 0.0
    %vm340 = vcmp.ge.f32.partialorder %v298, 0.0
    %vm341 = vcmp.ge.f32.partialorder %v303, 0.0
    %vm342 = vcmp.ge.f32.partialorder %v308, 0.0
    %vm343 = vcmp.ge.f32.partialorder %v313, 0.0
    %vm344 = vcmp.ge.f32.partialorder %v318, 0.0
    %vm345 = vcmp.ge.f32.partialorder %v323, 0.0
    %vm346 = vcmp.ge.f32.partialorder %v328, 0.0
    %v347 = vmul.f32 %v253, 0.01
    %v348 = vmul.f32 %v258, 0.01
    %v349 = vmul.f32 %v263, 0.01
    %v350 = vmul.f32 %v268, 0.01
    %v351 = vmul.f32 %v273, 0.01
    %v352 = vmul.f32 %v278, 0.01
    %v353 = vmul.f32 %v283, 0.01
    %v354 = vmul.f32 %v288, 0.01
    %v355 = vmul.f32 %v293, 0.01
    %v356 = vmul.f32 %v298, 0.01
    %v357 = vmul.f32 %v303, 0.01
    %v358 = vmul.f32 %v308, 0.01
    %v359 = vmul.f32 %v313, 0.01
    %v360 = vmul.f32 %v318, 0.01
    %v361 = vmul.f32 %v323, 0.01
    %v362 = vmul.f32 %v328, 0.01
    %v363 = vsel %vm331, %v253, %v347
    %v364 = vsel %vm332, %v258, %v348
    %v365 = vsel %vm333, %v263, %v349
    %v366 = vsel %vm334, %v268, %v350
    %v367 = vsel %vm335, %v273, %v351
    %v368 = vsel %vm336, %v278, %v352
    %v369 = vsel %vm337, %v283, %v353
    %v370 = vsel %vm338, %v288, %v354
    %v371 = vsel %vm339, %v293, %v355
    %v372 = vsel %vm340, %v298, %v356
    %v373 = vsel %vm341, %v303, %v357
    %v374 = vsel %vm342, %v308, %v358
    %v375 = vsel %vm343, %v313, %v359
    %v376 = vsel %vm344, %v318, %v360
    %v377 = vsel %vm345, %v323, %v361
    %v378 = vsel %vm346, %v328, %v362
    %v379 = vld [vmem:[%s3] sm:$0x3]
    %v380 = vld [vmem:[%s4] sm:$0x3]
    %382 = vset.pattern.permute.xlu0 0
    %383 = vperm.xlu0 %382, %v380
    %v384 = vpop.permute.xlu0 %383
    %386 = vmatprep.subr.mxu0 0.0
    %387 = vmatpush1.msra.mxu0 %v378
    %388 = vmatprep.subr.mxu0 0.0
    %389 = vmatpush1.msra.mxu0 %v377
    %390 = vmatprep.subr.mxu0 0.0
    %391 = vmatpush1.msra.mxu0 %v376
    %392 = vmatprep.subr.mxu0 0.0
    %393 = vmatpush1.msra.mxu0 %v375
    %394 = vmatprep.subr.mxu0 0.0
    %395 = vmatpush1.msra.mxu0 %v374
    %396 = vmatprep.subr.mxu0 0.0
    %397 = vmatpush1.msra.mxu0 %v373
    %398 = vmatprep.subr.mxu0 0.0
    %399 = vmatpush1.msra.mxu0 %v372
    %400 = vmatprep.subr.mxu0 0.0
    %401 = vmatpush1.msra.mxu0 %v371
    %402 = vmatprep.subr.mxu0 0.0
    %403 = vmatpush1.msra.mxu0 %v370
    %404 = vmatprep.subr.mxu0 0.0
    %405 = vmatpush1.msra.mxu0 %v369
    %406 = vmatprep.subr.mxu0 0.0
    %407 = vmatpush1.msra.mxu0 %v368
    %408 = vmatprep.subr.mxu0 0.0
    %409 = vmatpush1.msra.mxu0 %v367
    %410 = vmatprep.subr.mxu0 0.0
    %411 = vmatpush1.msra.mxu0 %v366
    %412 = vmatprep.subr.mxu0 0.0
    %413 = vmatpush1.msra.mxu0 %v365
    %414 = vmatprep.subr.mxu0 0.0
    %415 = vmatpush1.msra.mxu0 %v364
    %416 = vmatprep.subr.mxu0 0.0
    %417 = vmatpush1.msra.mxu0 %v363
    %418 = vmatprep.subr.mxu0 0.0
    %419 = vmatpush2.msra.mxu0 0.0
    %420 = vmatprep.subr.mxu0 0.0
    %421 = vmatpush2.msra.mxu0 0.0
    %422 = vmatprep.subr.mxu0 0.0
    %423 = vmatpush2.msra.mxu0 0.0
    %424 = vmatprep.subr.mxu0 0.0
    %425 = vmatpush2.msra.mxu0 0.0
    %426 = vmatprep.subr.mxu0 0.0
    %427 = vmatpush2.msra.mxu0 0.0
    %428 = vmatprep.subr.mxu0 0.0
    %429 = vmatpush2.msra.mxu0 0.0
    %430 = vmatprep.subr.mxu0 0.0
    %431 = vmatpush2.msra.mxu0 0.0
    %432 = vmatprep.subr.mxu0 0.0
    %433 = vmatpush2.msra.mxu0 0.0
    %434 = vmatprep.subr.mxu0 0.0
    %435 = vmatpush2.msra.mxu0 0.0
    %436 = vmatprep.subr.mxu0 0.0
    %437 = vmatpush2.msra.mxu0 0.0
    %438 = vmatprep.subr.mxu0 0.0
    %439 = vmatpush2.msra.mxu0 0.0
    %440 = vmatprep.subr.mxu0 0.0
    %441 = vmatpush2.msra.mxu0 0.0
    %442 = vmatprep.subr.mxu0 0.0
    %443 = vmatpush2.msra.mxu0 0.0
    %444 = vmatprep.subr.mxu0 0.0
    %445 = vmatpush2.msra.mxu0 0.0
    %446 = vmatprep.subr.mxu0 0.0
    %447 = vmatpush2.msra.mxu0 0.0
    %448 = vmatprep.subr.mxu0 0.0
    %449 = vmatpush2.msra.mxu0 0.0
    %450 = vmatprep.mubr.f32.mxu0 0.0
    %451 = vmatmul.mubr.f32.gmra.mxu0 %v379
    %v452 = vpop.f32.mrf.mxu0
    %v453 = vadd.f32 %v384, %v452
    %v454 = vpop.f32.mrf.mxu0
    %455 = vdwg.mxu0
    %vm456 = vcmask 58368
    %457 = vst.msk [vmem:[#allocation2] sm:$0x3] %vm456, %v453
    // Predicated region
    $region22: #{tpu_custom_call.1} parent=1 // pred_check
      _
    $region23: #{tpu_custom_call.1} parent=1 // pred_check_branch
      %459 = sbr.rel (0) target = $region25
    $region24: #{tpu_custom_call.1} parent=1 // pred_region
      %s461 = ssub.s32 32, 32
      %462 = vsyncadd [#allocation3], %s461
      %s464 = sshll.u32 [#allocation2], 4
      %s465 = int_to_ptr.vmem [resolvable:$true] %s464
      %467 = dma.vmem_to_hbm [thread:$0]  %s465, 32, %s5, [#allocation3]
    $region25: #{tpu_custom_call.1} parent=1 // pred_fallthru
      _
    // Predicated region
    $region26: #{tpu_custom_call.1} parent=1 // pred_check
      _
    $region27: #{tpu_custom_call.1} parent=1 // pred_check_branch
      %469 = sbr.rel (0) target = $region29
    $region28: #{tpu_custom_call.1} parent=1 // pred_region
      %470 = dma.done [#allocation3], 32
    $region29: #{tpu_custom_call.1} parent=1 // pred_fallthru
      _
    %471 = vsyncpa [#allocation3], 1

</llo_original>
